<compile_context>
chip_gen: v7x
topology: tpu7x:2x2x1
jax: 0.10.0
libtpu: 0.0.40
codegen_flags: <defaults>
</compile_context>

<pallas_src>
import jax
import jax.numpy as jnp
from jax.experimental import pallas as pl
from jax.experimental.pallas import tpu as pltpu


def _linear_kernel(x_ref, w_ref, b_ref, o_ref):
    """o = x @ w + b for one row-tile.

    x: (m_tile, F)  -- input dtype (f32 or bf16), cast on-chip to w's dtype
    w: (F, N)       -- resident across the whole grid (constant index_map)
    b: (1, N) f32
    o: (m_tile, N)  -- out_dtype (default f32)
    """
    # On-chip cast of the activation tile to the weight's storage dtype.
    # With a bf16-persisted weight this is VPU work hidden under the weight
    # DMA (bf16 MXU path, no wrapper convert launch); with an f32 weight it is
    # a no-op and the matmul runs as exact f32 nn.Linear.
    x = x_ref[...].astype(w_ref.dtype)
    acc = jnp.dot(x, w_ref[...], preferred_element_type=jnp.float32)
    # f32 epilogue (v5e has no bf16 VPU path); single cast at the store.
    o_ref[...] = (acc + b_ref[...].astype(jnp.float32)).astype(o_ref.dtype)


def prompt_encoder_forward(prompt, weight, bias, *, m_tile=None, out_dtype=None,
                           tiny_m_threshold=1024):
    """PromptEncoder.forward.

    prompt: (bs, seq, text_feature_dim)
    weight: (text_feature_dim, out_dim)   (transposed nn.Linear weight; may be
            persisted in bf16 once by the caller for the fast MXU path)
    bias:   (out_dim,) float32
    out_dtype: output dtype; None -> prompt.dtype (exact PyTorch semantics).
    Returns (bs, seq, out_dim)  == torch.cat([empty(bs,0,D), linear(prompt)], 1)
    """
    bs, seq, fdim = prompt.shape
    out_dim = weight.shape[-1]
    m = bs * seq
    if out_dtype is None:
        out_dtype = prompt.dtype

    # No dtype casts here (review): wrapper-side converts are separate XLA
    # launches that roughly triple the traffic they were meant to save.
    x2d = prompt.reshape(m, fdim)
    b2d = bias.reshape(1, out_dim).astype(jnp.float32)

    cost = pl.CostEstimate(
        flops=2 * m * fdim * out_dim,
        transcendentals=0,
        bytes_accessed=(m * fdim * x2d.dtype.itemsize
                        + fdim * out_dim * weight.dtype.itemsize
                        + out_dim * 4
                        + m * out_dim * jnp.dtype(out_dtype).itemsize),
    )

    if m <= tiny_m_threshold:
        # Tiny-M path (the module's real sizes, e.g. M = 16): the op is pure
        # launch/DMA overhead, so a single gridless block is fastest.
        out2d = pl.pallas_call(
            _linear_kernel,
            out_shape=jax.ShapeDtypeStruct((m, out_dim), out_dtype),
            in_specs=[
                pl.BlockSpec((m, fdim), lambda: (0, 0)),
                pl.BlockSpec((fdim, out_dim), lambda: (0, 0)),
                pl.BlockSpec((1, out_dim), lambda: (0, 0)),
            ],
            out_specs=pl.BlockSpec((m, out_dim), lambda: (0, 0)),
            cost_estimate=cost,
        )(x2d, weight, b2d)
        return out2d.reshape(bs, seq, out_dim)

    # ---- Large-M path: 1-D grid over rows, weight/bias VMEM-resident. ----
    if m_tile is None:
        # Big tiles amortize the ~0.35 us per-step overhead, but keep >= 4 grid
        # steps so v7x's two TensorCores both get work from the "parallel" axis.
        m_tile = min(1024, max(256, ((m // 4) // 256) * 256))
    m_tile = max(8, (m_tile // 8) * 8)  # sublane alignment

    grid_m = pl.cdiv(m, m_tile)
    m_pad = grid_m * m_tile
    if m_pad != m:
        # Pad the ragged tail (at most m_tile-1 rows) so every block is full;
        # the padded output rows are sliced off below.
        x2d = jnp.pad(x2d, ((0, m_pad - m), (0, 0)))

    out2d = pl.pallas_call(
        _linear_kernel,
        out_shape=jax.ShapeDtypeStruct((m_pad, out_dim), out_dtype),
        grid=(grid_m,),
        in_specs=[
            pl.BlockSpec((m_tile, fdim), lambda i: (i, 0)),
            pl.BlockSpec((fdim, out_dim), lambda i: (0, 0)),   # resident weight
            pl.BlockSpec((1, out_dim), lambda i: (0, 0)),      # resident bias
        ],
        out_specs=pl.BlockSpec((m_tile, out_dim), lambda i: (i, 0)),
        compiler_params=pltpu.CompilerParams(
            dimension_semantics=("parallel",)),
        cost_estimate=cost,
    )(x2d, weight, b2d)

    if m_pad != m:
        out2d = out2d[:m]
    return out2d.reshape(bs, seq, out_dim)


if __name__ == "__main__":
    # Module config (defaults from PromptEncoder.__init__)
    text_feature_dim = 512
    out_dim = 256  # == embed_dim

    # Small shapes consistent with forward(prompt): (bs, seq, text_feature_dim)
    bs, seq = 2, 8

    key = jax.random.PRNGKey(0)
    k_prompt, k_w, k_b, k_embed, k_p2 = jax.random.split(key, 5)

    # Synthetic parameters.  nn.Linear stores weight as (out, in); we keep the
    # transposed (in, out) layout for a lane-dense N=256 kernel output.
    weight = jax.random.normal(k_w, (text_feature_dim, out_dim), jnp.float32) * 0.02
    bias = jax.random.normal(k_b, (out_dim,), jnp.float32) * 0.02
    # no_mask_embed: nn.Embedding(1, embed_dim) — unused by forward(prompt).
    no_mask_embed = jax.random.normal(k_embed, (1, out_dim), jnp.float32) * 0.02  # noqa: F841

    prompt = jax.random.normal(k_prompt, (bs, seq, text_feature_dim), jnp.float32)

    # 1) Default path (tiny M -> single-block kernel), full-f32 nn.Linear math.
    out = jax.block_until_ready(prompt_encoder_forward(prompt, weight, bias))
    assert out.shape == (bs, seq, out_dim)
    assert out.dtype == prompt.dtype
    ref = (prompt.reshape(bs * seq, text_feature_dim) @ weight + bias).reshape(
        bs, seq, out_dim)
    assert jnp.allclose(out, ref, atol=2e-2, rtol=2e-2)

    # 2) Gridded large-M path (forced via thresholds): cdiv grid + ragged-tail
    #    padding, resident weight, "parallel" row axis.
    bs2, seq2 = 3, 40  # m = 120; m_tile = 32 -> grid of 4 with an 8-row pad
    prompt2 = jax.random.normal(k_p2, (bs2, seq2, text_feature_dim), jnp.float32)
    out2 = jax.block_until_ready(
        prompt_encoder_forward(prompt2, weight, bias, m_tile=32, tiny_m_threshold=0))
    assert out2.shape == (bs2, seq2, out_dim)
    ref2 = (prompt2.reshape(bs2 * seq2, text_feature_dim) @ weight + bias).reshape(
        bs2, seq2, out_dim)
    assert jnp.allclose(out2, ref2, atol=2e-2, rtol=2e-2)

    # 3) Recommended deployment: weight persisted in bf16 ONCE outside the hot
    #    path (no per-call convert launches); kernel casts x on-chip.
    w_bf16 = weight.astype(jnp.bfloat16)
    out3 = jax.block_until_ready(prompt_encoder_forward(prompt, w_bf16, bias))
    x_bf = prompt.astype(jnp.bfloat16).astype(jnp.float32)
    ref3 = (x_bf.reshape(bs * seq, text_feature_dim)
            @ w_bf16.astype(jnp.float32) + bias).reshape(bs, seq, out_dim)
    assert jnp.allclose(out3, ref3, atol=2e-2, rtol=2e-2)

    print("KERNEL_OK")
</pallas_src>

<mosaic_0001>
module attributes {stable_mosaic.version = 11 : i64} {
  func.func @_linear_kernel(%arg0: memref<16x512xf32, #tpu.memory_space<vmem>>, %arg1: memref<512x256xf32, #tpu.memory_space<vmem>>, %arg2: memref<1x256xf32, #tpu.memory_space<vmem>>, %arg3: memref<16x256xf32, #tpu.memory_space<vmem>>) attributes {dimension_semantics = [], scalar_prefetch = 0 : i64, scratch_operands = 0 : i64, tpu.core_type = #tpu.core_type<tc>} {
    %c0 = arith.constant 0 : index
    %c0_0 = arith.constant 0 : index
    %0 = vector.load %arg0[%c0, %c0_0] : memref<16x512xf32, #tpu.memory_space<vmem>>, vector<16x512xf32>
    %c0_1 = arith.constant 0 : index
    %c0_2 = arith.constant 0 : index
    %1 = vector.load %arg1[%c0_1, %c0_2] : memref<512x256xf32, #tpu.memory_space<vmem>>, vector<512x256xf32>
    %cst = arith.constant dense<0.000000e+00> : vector<16x256xf32>
    %2 = tpu.matmul %0, %1, %cst {dimension_numbers = #tpu.dot_dimension_numbers<[1], [0], [0], [1], [0, 0, 1, 1], [], []>} : vector<16x512xf32>, vector<512x256xf32>, vector<16x256xf32> -> vector<16x256xf32>
    %c0_3 = arith.constant 0 : index
    %c0_4 = arith.constant 0 : index
    %3 = vector.load %arg2[%c0_3, %c0_4] : memref<1x256xf32, #tpu.memory_space<vmem>>, vector<1x256xf32>
    %4 = vector.broadcast %3 : vector<1x256xf32> to vector<16x256xf32>
    %5 = arith.addf %2, %4 : vector<16x256xf32>
    %c0_5 = arith.constant 0 : index
    %c0_6 = arith.constant 0 : index
    %6 = vector.load %arg3[%c0_5, %c0_6] : memref<16x256xf32, #tpu.memory_space<vmem>>, vector<16x256xf32>
    tpu.vector_store %arg3[%c0_5, %c0_6], %5 {strides = array<i32>} : memref<16x256xf32, #tpu.memory_space<vmem>>, vector<16x256xf32>,
    return
  }
}

</mosaic_0001>

<llo_original>
// kernel: tpu_custom_call.1
$region0: #{tpu_custom_call.1}
  #allocation0 [shape = 'u32[]', space=smem, size = 0x4, offset = 0x4, fixed_abs, tag = 'smem constant byte address 0x4 - core index']
  #allocation1 [shape = 'u32[144,128]{1,0:T(1,128)}', space=vmem, size = 0x12000, scoped, tag = 'internal scratch']
  %s0 = inlined_call_operand.hbm [shape: f32[16,512], index: 0, kind: input, shape index: {}]
  %s1 = inlined_call_operand.hbm [shape: f32[512,256], index: 1, kind: input, shape index: {}]
  %s2 = inlined_call_operand.vmem [shape: f32[1,256], index: 2, kind: input, shape index: {}]
  %s3 = inlined_call_operand.hbm [shape: f32[16,256], index: 3, kind: output, shape index: {}]
  %s4 = sld [smem:[#allocation0]]
  $region30: #{tpu_custom_call.1} parent=0
    _
  %s6 = ssub.s32 1, %s4
  %s7 = scalar_select 0, %s6, %s4
  $region1: #{tpu_custom_call.1} parent=0
    #allocation2 [shape = 'u8[32768]{0}', space=vmem, size = 0x8000, scoped, tag = 'input window, operand 0, single buffered']
    #allocation3 [shape = 's32[1]{0}', space=sflag, size = 0x4, scoped, tag = 'scoped memory for tpu_custom_call.1']
    #allocation4 [shape = 's32[1]{0}', space=sflag, size = 0x4, scoped, tag = 'scoped memory for tpu_custom_call.1']
    #allocation5 [shape = 'u8[524288]{0}', space=vmem, size = 0x80000, scoped, tag = 'input window, operand 1, single buffered']
    #allocation6 [shape = 's32[1]{0}', space=sflag, size = 0x4, scoped, tag = 'scoped memory for tpu_custom_call.1']
    #allocation7 [shape = 'u8[16384]{0}', space=vmem, size = 0x4000, scoped, tag = 'output window, operand 0, single buffered']
    %8 = vsyncpa [#allocation3], 0
    %9 = vsyncpa [#allocation6], 0
    %10 = vsyncpa [#allocation4], 0
    // Predicated region
    $region2: #{tpu_custom_call.1} parent=1 // pred_check
      _
    $region3: #{tpu_custom_call.1} parent=1 // pred_check_branch
      %12 = sbr.rel (0) target = $region5
    $region4: #{tpu_custom_call.1} parent=1 // pred_region
      %s14 = ssub.s32 1024, 1024
      %15 = vsyncadd [#allocation3], %s14
      %s16 = sshll.u32 [#allocation2], 4
      %s17 = int_to_ptr.vmem [resolvable:$true] %s16
      %22 = dma.hbm_to_vmem [thread:$0]  %s0, 1024, %s17, [#allocation3], 512, 512, 32
    $region5: #{tpu_custom_call.1} parent=1 // pred_fallthru
      _
    // Predicated region
    $region6: #{tpu_custom_call.1} parent=1 // pred_check
      _
    $region7: #{tpu_custom_call.1} parent=1 // pred_check_branch
      %24 = sbr.rel (0) target = $region9
    $region8: #{tpu_custom_call.1} parent=1 // pred_region
      %s26 = ssub.s32 16384, 16384
      %27 = vsyncadd [#allocation6], %s26
      %s28 = sshll.u32 [#allocation5], 4
      %s29 = int_to_ptr.vmem [resolvable:$true] %s28
      %34 = dma.hbm_to_vmem [thread:$0]  %s1, 16384, %s29, [#allocation6], 256, 256, 16
    $region9: #{tpu_custom_call.1} parent=1 // pred_fallthru
      _
    // Predicated region
    $region10: #{tpu_custom_call.1} parent=1 // pred_check
      _
    $region11: #{tpu_custom_call.1} parent=1 // pred_check_branch
      %36 = sbr.rel (0) target = $region13
    $region12: #{tpu_custom_call.1} parent=1 // pred_region
      _
    $region13: #{tpu_custom_call.1} parent=1 // pred_fallthru
      _
    // Predicated region
    $region14: #{tpu_custom_call.1} parent=1 // pred_check
      _
    $region15: #{tpu_custom_call.1} parent=1 // pred_check_branch
      %38 = sbr.rel (0) target = $region17
    $region16: #{tpu_custom_call.1} parent=1 // pred_region
      %39 = dma.done [#allocation3], 1024
    $region17: #{tpu_custom_call.1} parent=1 // pred_fallthru
      _
    // Predicated region
    $region18: #{tpu_custom_call.1} parent=1 // pred_check
      _
    $region19: #{tpu_custom_call.1} parent=1 // pred_check_branch
      %41 = sbr.rel (0) target = $region21
    $region20: #{tpu_custom_call.1} parent=1 // pred_region
      %42 = dma.done [#allocation6], 16384
    $region21: #{tpu_custom_call.1} parent=1 // pred_fallthru
      _
    %v43 = vld [vmem:[#allocation2] sm:$0xff]
    %v44 = vld [vmem:[#allocation2 + $0x8] sm:$0xff]
    %v45 = vld [vmem:[#allocation2 + $0x10] sm:$0xff]
    %v46 = vld [vmem:[#allocation2 + $0x18] sm:$0xff]
    %v47 = vld [vmem:[#allocation2 + $0x20] sm:$0xff]
    %v48 = vld [vmem:[#allocation2 + $0x28] sm:$0xff]
    %v49 = vld [vmem:[#allocation2 + $0x30] sm:$0xff]
    %v50 = vld [vmem:[#allocation2 + $0x38] sm:$0xff]
    %v51 = vld [vmem:[#allocation5] sm:$0xff]
    %v52 = vld [vmem:[#allocation5 + $0x8] sm:$0xff]
    %v53 = vld [vmem:[#allocation5 + $0x10] sm:$0xff]
    %v54 = vld [vmem:[#allocation5 + $0x18] sm:$0xff]
    %v55 = vld [vmem:[#allocation5 + $0x20] sm:$0xff]
    %v56 = vld [vmem:[#allocation5 + $0x28] sm:$0xff]
    %v57 = vld [vmem:[#allocation5 + $0x30] sm:$0xff]
    %v58 = vld [vmem:[#allocation5 + $0x38] sm:$0xff]
    %v59 = vld [vmem:[#allocation5 + $0x40] sm:$0xff]
    %v60 = vld [vmem:[#allocation5 + $0x48] sm:$0xff]
    %v61 = vld [vmem:[#allocation5 + $0x50] sm:$0xff]
    %v62 = vld [vmem:[#allocation5 + $0x58] sm:$0xff]
    %v63 = vld [vmem:[#allocation5 + $0x60] sm:$0xff]
    %v64 = vld [vmem:[#allocation5 + $0x68] sm:$0xff]
    %v65 = vld [vmem:[#allocation5 + $0x70] sm:$0xff]
    %v66 = vld [vmem:[#allocation5 + $0x78] sm:$0xff]
    %v67 = vld [vmem:[#allocation5 + $0x80] sm:$0xff]
    %v68 = vld [vmem:[#allocation5 + $0x88] sm:$0xff]
    %v69 = vld [vmem:[#allocation5 + $0x90] sm:$0xff]
    %v70 = vld [vmem:[#allocation5 + $0x98] sm:$0xff]
    %v71 = vld [vmem:[#allocation5 + $0xa0] sm:$0xff]
    %v72 = vld [vmem:[#allocation5 + $0xa8] sm:$0xff]
    %v73 = vld [vmem:[#allocation5 + $0xb0] sm:$0xff]
    %v74 = vld [vmem:[#allocation5 + $0xb8] sm:$0xff]
    %v75 = vld [vmem:[#allocation5 + $0xc0] sm:$0xff]
    %v76 = vld [vmem:[#allocation5 + $0xc8] sm:$0xff]
    %v77 = vld [vmem:[#allocation5 + $0xd0] sm:$0xff]
    %v78 = vld [vmem:[#allocation5 + $0xd8] sm:$0xff]
    %v79 = vld [vmem:[#allocation5 + $0xe0] sm:$0xff]
    %v80 = vld [vmem:[#allocation5 + $0xe8] sm:$0xff]
    %v81 = vld [vmem:[#allocation5 + $0xf0] sm:$0xff]
    %v82 = vld [vmem:[#allocation5 + $0xf8] sm:$0xff]
    %v83 = vld [vmem:[#allocation5 + $0x100] sm:$0xff]
    %v84 = vld [vmem:[#allocation5 + $0x108] sm:$0xff]
    %v85 = vld [vmem:[#allocation5 + $0x110] sm:$0xff]
    %v86 = vld [vmem:[#allocation5 + $0x118] sm:$0xff]
    %v87 = vld [vmem:[#allocation5 + $0x120] sm:$0xff]
    %v88 = vld [vmem:[#allocation5 + $0x128] sm:$0xff]
    %v89 = vld [vmem:[#allocation5 + $0x130] sm:$0xff]
    %v90 = vld [vmem:[#allocation5 + $0x138] sm:$0xff]
    %v91 = vld [vmem:[#allocation5 + $0x140] sm:$0xff]
    %v92 = vld [vmem:[#allocation5 + $0x148] sm:$0xff]
    %v93 = vld [vmem:[#allocation5 + $0x150] sm:$0xff]
    %v94 = vld [vmem:[#allocation5 + $0x158] sm:$0xff]
    %v95 = vld [vmem:[#allocation5 + $0x160] sm:$0xff]
    %v96 = vld [vmem:[#allocation5 + $0x168] sm:$0xff]
    %v97 = vld [vmem:[#allocation5 + $0x170] sm:$0xff]
    %v98 = vld [vmem:[#allocation5 + $0x178] sm:$0xff]
    %v99 = vld [vmem:[#allocation5 + $0x180] sm:$0xff]
    %v100 = vld [vmem:[#allocation5 + $0x188] sm:$0xff]
    %v101 = vld [vmem:[#allocation5 + $0x190] sm:$0xff]
    %v102 = vld [vmem:[#allocation5 + $0x198] sm:$0xff]
    %v103 = vld [vmem:[#allocation5 + $0x1a0] sm:$0xff]
    %v104 = vld [vmem:[#allocation5 + $0x1a8] sm:$0xff]
    %v105 = vld [vmem:[#allocation5 + $0x1b0] sm:$0xff]
    %v106 = vld [vmem:[#allocation5 + $0x1b8] sm:$0xff]
    %v107 = vld [vmem:[#allocation5 + $0x1c0] sm:$0xff]
    %v108 = vld [vmem:[#allocation5 + $0x1c8] sm:$0xff]
    %v109 = vld [vmem:[#allocation5 + $0x1d0] sm:$0xff]
    %v110 = vld [vmem:[#allocation5 + $0x1d8] sm:$0xff]
    %v111 = vld [vmem:[#allocation5 + $0x1e0] sm:$0xff]
    %v112 = vld [vmem:[#allocation5 + $0x1e8] sm:$0xff]
    %v113 = vld [vmem:[#allocation5 + $0x1f0] sm:$0xff]
    %v114 = vld [vmem:[#allocation5 + $0x1f8] sm:$0xff]
    %v115 = vld [vmem:[#allocation5 + $0x200] sm:$0xff]
    %v116 = vld [vmem:[#allocation5 + $0x208] sm:$0xff]
    %v117 = vld [vmem:[#allocation5 + $0x210] sm:$0xff]
    %v118 = vld [vmem:[#allocation5 + $0x218] sm:$0xff]
    %v119 = vld [vmem:[#allocation5 + $0x220] sm:$0xff]
    %v120 = vld [vmem:[#allocation5 + $0x228] sm:$0xff]
    %v121 = vld [vmem:[#allocation5 + $0x230] sm:$0xff]
    %v122 = vld [vmem:[#allocation5 + $0x238] sm:$0xff]
    %v123 = vld [vmem:[#allocation5 + $0x240] sm:$0xff]
    %v124 = vld [vmem:[#allocation5 + $0x248] sm:$0xff]
    %v125 = vld [vmem:[#allocation5 + $0x250] sm:$0xff]
    %v126 = vld [vmem:[#allocation5 + $0x258] sm:$0xff]
    %v127 = vld [vmem:[#allocation5 + $0x260] sm:$0xff]
    %v128 = vld [vmem:[#allocation5 + $0x268] sm:$0xff]
    %v129 = vld [vmem:[#allocation5 + $0x270] sm:$0xff]
    %v130 = vld [vmem:[#allocation5 + $0x278] sm:$0xff]
    %v131 = vld [vmem:[#allocation5 + $0x280] sm:$0xff]
    %v132 = vld [vmem:[#allocation5 + $0x288] sm:$0xff]
    %v133 = vld [vmem:[#allocation5 + $0x290] sm:$0xff]
    %v134 = vld [vmem:[#allocation5 + $0x298] sm:$0xff]
    %v135 = vld [vmem:[#allocation5 + $0x2a0] sm:$0xff]
    %v136 = vld [vmem:[#allocation5 + $0x2a8] sm:$0xff]
    %v137 = vld [vmem:[#allocation5 + $0x2b0] sm:$0xff]
    %v138 = vld [vmem:[#allocation5 + $0x2b8] sm:$0xff]
    %v139 = vld [vmem:[#allocation5 + $0x2c0] sm:$0xff]
    %v140 = vld [vmem:[#allocation5 + $0x2c8] sm:$0xff]
    %v141 = vld [vmem:[#allocation5 + $0x2d0] sm:$0xff]
    %v142 = vld [vmem:[#allocation5 + $0x2d8] sm:$0xff]
    %v143 = vld [vmem:[#allocation5 + $0x2e0] sm:$0xff]
    %v144 = vld [vmem:[#allocation5 + $0x2e8] sm:$0xff]
    %v145 = vld [vmem:[#allocation5 + $0x2f0] sm:$0xff]
    %v146 = vld [vmem:[#allocation5 + $0x2f8] sm:$0xff]
    %v147 = vld [vmem:[#allocation5 + $0x300] sm:$0xff]
    %v148 = vld [vmem:[#allocation5 + $0x308] sm:$0xff]
    %v149 = vld [vmem:[#allocation5 + $0x310] sm:$0xff]
    %v150 = vld [vmem:[#allocation5 + $0x318] sm:$0xff]
    %v151 = vld [vmem:[#allocation5 + $0x320] sm:$0xff]
    %v152 = vld [vmem:[#allocation5 + $0x328] sm:$0xff]
    %v153 = vld [vmem:[#allocation5 + $0x330] sm:$0xff]
    %v154 = vld [vmem:[#allocation5 + $0x338] sm:$0xff]
    %v155 = vld [vmem:[#allocation5 + $0x340] sm:$0xff]
    %v156 = vld [vmem:[#allocation5 + $0x348] sm:$0xff]
    %v157 = vld [vmem:[#allocation5 + $0x350] sm:$0xff]
    %v158 = vld [vmem:[#allocation5 + $0x358] sm:$0xff]
    %v159 = vld [vmem:[#allocation5 + $0x360] sm:$0xff]
    %v160 = vld [vmem:[#allocation5 + $0x368] sm:$0xff]
    %v161 = vld [vmem:[#allocation5 + $0x370] sm:$0xff]
    %v162 = vld [vmem:[#allocation5 + $0x378] sm:$0xff]
    %v163 = vld [vmem:[#allocation5 + $0x380] sm:$0xff]
    %v164 = vld [vmem:[#allocation5 + $0x388] sm:$0xff]
    %v165 = vld [vmem:[#allocation5 + $0x390] sm:$0xff]
    %v166 = vld [vmem:[#allocation5 + $0x398] sm:$0xff]
    %v167 = vld [vmem:[#allocation5 + $0x3a0] sm:$0xff]
    %v168 = vld [vmem:[#allocation5 + $0x3a8] sm:$0xff]
    %v169 = vld [vmem:[#allocation5 + $0x3b0] sm:$0xff]
    %v170 = vld [vmem:[#allocation5 + $0x3b8] sm:$0xff]
    %v171 = vld [vmem:[#allocation5 + $0x3c0] sm:$0xff]
    %v172 = vld [vmem:[#allocation5 + $0x3c8] sm:$0xff]
    %v173 = vld [vmem:[#allocation5 + $0x3d0] sm:$0xff]
    %v174 = vld [vmem:[#allocation5 + $0x3d8] sm:$0xff]
    %v175 = vld [vmem:[#allocation5 + $0x3e0] sm:$0xff]
    %v176 = vld [vmem:[#allocation5 + $0x3e8] sm:$0xff]
    %v177 = vld [vmem:[#allocation5 + $0x3f0] sm:$0xff]
    %v178 = vld [vmem:[#allocation5 + $0x3f8] sm:$0xff]
    %v179 = vld [vmem:[%s2] sm:$0x3]
    %v181 = vlaneseq
    %v182 = vshrl.u32 %v181, 7
    %v183 = vsub.s32 0, %v182
    %v184 = vrot.slane %v179, %v183
    %v185 = vlaneseq
    %v186 = vshrl.u32 %v185, 7
    %v187 = vsub.s32 1, %v186
    %v188 = vrot.slane %v179, %v187
    %191 = vmatprep.subr.mxu0 %v52
    %192 = vmatpush1.msra.mxu0 %v51
    %193 = vmatprep.subr.mxu0 %v54
    %194 = vmatpush1.msra.mxu0 %v53
    %195 = vmatprep.subr.mxu0 %v56
    %196 = vmatpush1.msra.mxu0 %v55
    %197 = vmatprep.subr.mxu0 %v58
    %198 = vmatpush1.msra.mxu0 %v57
    %199 = vmatprep.subr.mxu0 %v60
    %200 = vmatpush1.msra.mxu0 %v59
    %201 = vmatprep.subr.mxu0 %v62
    %202 = vmatpush1.msra.mxu0 %v61
    %203 = vmatprep.subr.mxu0 %v64
    %204 = vmatpush1.msra.mxu0 %v63
    %205 = vmatprep.subr.mxu0 %v66
    %206 = vmatpush1.msra.mxu0 %v65
    %207 = vmatprep.subr.mxu0 %v68
    %208 = vmatpush1.msra.mxu0 %v67
    %209 = vmatprep.subr.mxu0 %v70
    %210 = vmatpush1.msra.mxu0 %v69
    %211 = vmatprep.subr.mxu0 %v72
    %212 = vmatpush1.msra.mxu0 %v71
    %213 = vmatprep.subr.mxu0 %v74
    %214 = vmatpush1.msra.mxu0 %v73
    %215 = vmatprep.subr.mxu0 %v76
    %216 = vmatpush1.msra.mxu0 %v75
    %217 = vmatprep.subr.mxu0 %v78
    %218 = vmatpush1.msra.mxu0 %v77
    %219 = vmatprep.subr.mxu0 %v80
    %220 = vmatpush1.msra.mxu0 %v79
    %221 = vmatprep.subr.mxu0 %v82
    %222 = vmatpush1.msra.mxu0 %v81
    %223 = vmatprep.subr.mxu0 %v84
    %224 = vmatpush1.msra.mxu0 %v83
    %225 = vmatprep.subr.mxu0 %v86
    %226 = vmatpush1.msra.mxu0 %v85
    %227 = vmatprep.subr.mxu0 %v88
    %228 = vmatpush1.msra.mxu0 %v87
    %229 = vmatprep.subr.mxu0 %v90
    %230 = vmatpush1.msra.mxu0 %v89
    %231 = vmatprep.subr.mxu0 %v92
    %232 = vmatpush1.msra.mxu0 %v91
    %233 = vmatprep.subr.mxu0 %v94
    %234 = vmatpush1.msra.mxu0 %v93
    %235 = vmatprep.subr.mxu0 %v96
    %236 = vmatpush1.msra.mxu0 %v95
    %237 = vmatprep.subr.mxu0 %v98
    %238 = vmatpush1.msra.mxu0 %v97
    %239 = vmatprep.subr.mxu0 %v100
    %240 = vmatpush1.msra.mxu0 %v99
    %241 = vmatprep.subr.mxu0 %v102
    %242 = vmatpush1.msra.mxu0 %v101
    %243 = vmatprep.subr.mxu0 %v104
    %244 = vmatpush1.msra.mxu0 %v103
    %245 = vmatprep.subr.mxu0 %v106
    %246 = vmatpush1.msra.mxu0 %v105
    %247 = vmatprep.subr.mxu0 %v108
    %248 = vmatpush1.msra.mxu0 %v107
    %249 = vmatprep.subr.mxu0 %v110
    %250 = vmatpush1.msra.mxu0 %v109
    %251 = vmatprep.subr.mxu0 %v112
    %252 = vmatpush1.msra.mxu0 %v111
    %253 = vmatprep.subr.mxu0 %v114
    %254 = vmatpush1.msra.mxu0 %v113
    %255 = vmatprep.mubr.f32.mxu0 %v44
    %256 = vmatmul.mubr.f32.gmra.mrb[0].mxu0 %v43
    %v257 = vpop.f32.mrb[0].mxu0
    %v258 = vadd.f32 %v184, %v257
    %v259 = vpop.f32.mrb[0].mxu0
    %v260 = vadd.f32 %v188, %v259
    %261 = vmatprep.mubr.f32.mxu0 %v48
    %262 = vmatmul.mubr.f32.gmra.mrb[0].mxu0 %v47
    %v263 = vpop.f32.mrb[0].mxu0
    %v264 = vadd.f32 %v184, %v263
    %v265 = vpop.f32.mrb[0].mxu0
    %v266 = vadd.f32 %v188, %v265
    %267 = vdwg.mxu0
    %268 = vmatprep.subr.mxu0 %v116
    %269 = vmatpush1.msra.mxu0 %v115
    %270 = vmatprep.subr.mxu0 %v118
    %271 = vmatpush1.msra.mxu0 %v117
    %272 = vmatprep.subr.mxu0 %v120
    %273 = vmatpush1.msra.mxu0 %v119
    %274 = vmatprep.subr.mxu0 %v122
    %275 = vmatpush1.msra.mxu0 %v121
    %276 = vmatprep.subr.mxu0 %v124
    %277 = vmatpush1.msra.mxu0 %v123
    %278 = vmatprep.subr.mxu0 %v126
    %279 = vmatpush1.msra.mxu0 %v125
    %280 = vmatprep.subr.mxu0 %v128
    %281 = vmatpush1.msra.mxu0 %v127
    %282 = vmatprep.subr.mxu0 %v130
    %283 = vmatpush1.msra.mxu0 %v129
    %284 = vmatprep.subr.mxu0 %v132
    %285 = vmatpush1.msra.mxu0 %v131
    %286 = vmatprep.subr.mxu0 %v134
    %287 = vmatpush1.msra.mxu0 %v133
    %288 = vmatprep.subr.mxu0 %v136
    %289 = vmatpush1.msra.mxu0 %v135
    %290 = vmatprep.subr.mxu0 %v138
    %291 = vmatpush1.msra.mxu0 %v137
    %292 = vmatprep.subr.mxu0 %v140
    %293 = vmatpush1.msra.mxu0 %v139
    %294 = vmatprep.subr.mxu0 %v142
    %295 = vmatpush1.msra.mxu0 %v141
    %296 = vmatprep.subr.mxu0 %v144
    %297 = vmatpush1.msra.mxu0 %v143
    %298 = vmatprep.subr.mxu0 %v146
    %299 = vmatpush1.msra.mxu0 %v145
    %300 = vmatprep.subr.mxu0 %v148
    %301 = vmatpush1.msra.mxu0 %v147
    %302 = vmatprep.subr.mxu0 %v150
    %303 = vmatpush1.msra.mxu0 %v149
    %304 = vmatprep.subr.mxu0 %v152
    %305 = vmatpush1.msra.mxu0 %v151
    %306 = vmatprep.subr.mxu0 %v154
    %307 = vmatpush1.msra.mxu0 %v153
    %308 = vmatprep.subr.mxu0 %v156
    %309 = vmatpush1.msra.mxu0 %v155
    %310 = vmatprep.subr.mxu0 %v158
    %311 = vmatpush1.msra.mxu0 %v157
    %312 = vmatprep.subr.mxu0 %v160
    %313 = vmatpush1.msra.mxu0 %v159
    %314 = vmatprep.subr.mxu0 %v162
    %315 = vmatpush1.msra.mxu0 %v161
    %316 = vmatprep.subr.mxu0 %v164
    %317 = vmatpush1.msra.mxu0 %v163
    %318 = vmatprep.subr.mxu0 %v166
    %319 = vmatpush1.msra.mxu0 %v165
    %320 = vmatprep.subr.mxu0 %v168
    %321 = vmatpush1.msra.mxu0 %v167
    %322 = vmatprep.subr.mxu0 %v170
    %323 = vmatpush1.msra.mxu0 %v169
    %324 = vmatprep.subr.mxu0 %v172
    %325 = vmatpush1.msra.mxu0 %v171
    %326 = vmatprep.subr.mxu0 %v174
    %327 = vmatpush1.msra.mxu0 %v173
    %328 = vmatprep.subr.mxu0 %v176
    %329 = vmatpush1.msra.mxu0 %v175
    %330 = vmatprep.subr.mxu0 %v178
    %331 = vmatpush1.msra.mxu0 %v177
    %332 = vmatprep.mubr.f32.mxu0 %v46
    %333 = vmatmul.mubr.f32.gmra.mrb[0].mxu0 %v45
    %v334 = vpop.f32.mrb[0].mxu0
    %v335 = vadd.f32 %v258, %v334
    %v336 = vpop.f32.mrb[0].mxu0
    %v337 = vadd.f32 %v260, %v336
    %338 = vmatprep.mubr.f32.mxu0 %v50
    %339 = vmatmul.mubr.f32.gmra.mrb[0].mxu0 %v49
    %v340 = vpop.f32.mrb[0].mxu0
    %v341 = vadd.f32 %v264, %v340
    %v342 = vpop.f32.mrb[0].mxu0
    %v343 = vadd.f32 %v266, %v342
    %344 = vdwg.mxu0
    %345 = vst [vmem:[#allocation7] sm:$0xff] %v335
    %346 = vst [vmem:[#allocation7 + $0x8] sm:$0xff] %v337
    %347 = vst [vmem:[#allocation7 + $0x10] sm:$0xff] %v341
    %348 = vst [vmem:[#allocation7 + $0x18] sm:$0xff] %v343
    // Predicated region
    $region22: #{tpu_custom_call.1} parent=1 // pred_check
      _
    $region23: #{tpu_custom_call.1} parent=1 // pred_check_branch
      %350 = sbr.rel (0) target = $region25
    $region24: #{tpu_custom_call.1} parent=1 // pred_region
      %s352 = ssub.s32 512, 512
      %353 = vsyncadd [#allocation4], %s352
      %s354 = sshll.u32 [#allocation7], 4
      %s355 = int_to_ptr.vmem [resolvable:$true] %s354
      %360 = dma.vmem_to_hbm [thread:$0]  %s355, 512, %s3, [#allocation4], 256, 256, 16
    $region25: #{tpu_custom_call.1} parent=1 // pred_fallthru
      _
    // Predicated region
    $region26: #{tpu_custom_call.1} parent=1 // pred_check
      _
    $region27: #{tpu_custom_call.1} parent=1 // pred_check_branch
      %362 = sbr.rel (0) target = $region29
    $region28: #{tpu_custom_call.1} parent=1 // pred_region
      %363 = dma.done [#allocation4], 512
    $region29: #{tpu_custom_call.1} parent=1 // pred_fallthru
      _
    %364 = vsyncpa [#allocation3], 1
    %365 = vsyncpa [#allocation6], 1
    %366 = vsyncpa [#allocation4], 1

</llo_original>
